<compile_context>
chip_gen: v7x
topology: tpu7x:2x2x1
jax: 0.10.0
libtpu: 0.0.40
codegen_flags: <defaults>
</compile_context>

<pallas_src>
import math
import functools

import jax
import jax.numpy as jnp
from jax.experimental import pallas as pl
from jax.experimental.pallas import tpu as pltpu


# MXU operand dtype.  bf16 gives ~2x MXU throughput on v6e/v7x (more on v5e) and
# halves weight / K / V / intermediate HBM+VMEM bytes; accumulation stays f32.
_MXU_DTYPE = jnp.bfloat16

# Explicit VMEM budget: safe on v7x's 64 MiB physical VMEM.
# On v5e/v6e (128 MiB) this can be raised to ~100 MiB to enable larger tiles.
_VMEM_LIMIT = 48 * 1024 * 1024


def _pick_block(dim, candidates):
    """Largest preferred tile that evenly divides `dim`, else the full dim."""
    for c in candidates:
        if dim >= c and dim % c == 0:
            return c
    return dim


# ----------------------------------------------------------------------------
# Kernel 1: tiled matmul with f32 VMEM accumulator (fused QKV projection)
# ----------------------------------------------------------------------------
def _matmul_kernel(x_ref, w_ref, o_ref, acc_ref):
    @pl.when(pl.program_id(2) == 0)
    def _():
        acc_ref[...] = jnp.zeros_like(acc_ref)

    # Operands arrive pre-cast (bf16); accumulate in f32 on the MXU.
    acc_ref[...] += jnp.dot(x_ref[...], w_ref[...],
                            preferred_element_type=jnp.float32)

    @pl.when(pl.program_id(2) == pl.num_programs(2) - 1)
    def _():
        o_ref[...] = acc_ref[...].astype(o_ref.dtype)


def pallas_matmul(x, w, out_dtype=jnp.float32):
    """x: [M, K], w: [K, N] -> [M, N] in out_dtype, tiled & K-accumulated."""
    M, K = x.shape
    K2, N = w.shape
    assert K == K2
    tm = _pick_block(M, (512, 256, 128, 64, 32, 16, 8))
    tn = _pick_block(N, (512, 256, 128))
    tk = _pick_block(K, (512, 256, 128))
    grid = (M // tm, N // tn, K // tk)
    return pl.pallas_call(
        _matmul_kernel,
        out_shape=jax.ShapeDtypeStruct((M, N), out_dtype),
        grid=grid,
        in_specs=[
            pl.BlockSpec((tm, tk), lambda i, j, k: (i, k)),
            pl.BlockSpec((tk, tn), lambda i, j, k: (k, j)),
        ],
        out_specs=pl.BlockSpec((tm, tn), lambda i, j, k: (i, j)),
        scratch_shapes=[pltpu.VMEM((tm, tn), jnp.float32)],
        compiler_params=pltpu.CompilerParams(
            dimension_semantics=("parallel", "parallel", "arbitrary"),
            vmem_limit_bytes=_VMEM_LIMIT,
        ),
    )(x, w)


# ----------------------------------------------------------------------------
# Kernel 2: fused ComRoPE attention on a (batch, head, q-tile) grid
# ----------------------------------------------------------------------------
def _comrope_attn_kernel(q_ref, k_ref, v_ref, cos_ref, sin_ref, bm_ref, out_ref,
                         *rest, head_dim, q_tile, with_attn):
    if with_attn:
        attn_ref = rest[0]
        rest = rest[1:]
    else:
        attn_ref = None
    kemb_t_ref, scores_ref, acc_ref = rest

    S = k_ref.shape[0]
    half = head_dim // 2
    scale = 1.0 / math.sqrt(head_dim)
    qi = pl.program_id(2)
    nkv = S // q_tile                     # key/value blocks share the q tile size

    def rot_half(t):
        # rotate_half's sign is pre-folded into sin_ref, so this is a pure half
        # rotation (for shift == head_dim//2 both roll directions coincide).
        if head_dim % 128 == 0:
            return pltpu.roll(t, shift=half, axis=-1)
        return jnp.concatenate((t[:, half:], t[:, :half]), axis=-1)

    # k_emb is identical for every query tile of this (b, h): compute it once,
    # store it transposed [hd, S] in bf16 so QK^T is a plain MXU matmul with no
    # per-q-tile RHS transform.
    @pl.when(qi == 0)
    def _():
        k = k_ref[...].astype(jnp.float32)
        k_emb = k * cos_ref[...] + rot_half(k) * sin_ref[...] + bm_ref[...]
        kemb_t_ref[...] = jnp.transpose(k_emb).astype(kemb_t_ref.dtype)

    q_off = pl.multiple_of(qi * q_tile, q_tile)
    cos_q = cos_ref[pl.ds(q_off, q_tile), :]
    sin_q = sin_ref[pl.ds(q_off, q_tile), :]
    bm_q = bm_ref[pl.ds(q_off, q_tile), :]

    q = q_ref[...].astype(jnp.float32)
    # 1/sqrt(head_dim) is folded into q_emb before the bf16 cast
    # (tq*hd multiplies instead of tq*S on the score tile).
    q_emb = ((q * cos_q + rot_half(q) * sin_q + bm_q) * scale).astype(_MXU_DTYPE)

    # ---- scores: key blocks entirely above the diagonal are skipped ----------
    scores_ref[...] = jnp.full((q_tile, S), -jnp.inf, dtype=jnp.float32)
    row = jax.lax.broadcasted_iota(jnp.int32, (q_tile, q_tile), 0) + q_off
    for j in range(nkv):                   # static unroll over kv blocks
        col = jax.lax.broadcasted_iota(jnp.int32, (q_tile, q_tile), 1) + j * q_tile

        @pl.when(j <= qi)
        def _():
            s_j = jnp.dot(q_emb, kemb_t_ref[:, j * q_tile:(j + 1) * q_tile],
                          preferred_element_type=jnp.float32)
            scores_ref[:, j * q_tile:(j + 1) * q_tile] = jnp.where(
                col > row, -jnp.inf, s_j)

    # ---- softmax over the full row (masked columns are -inf -> weight 0) -----
    scores = scores_ref[...]
    m = jnp.max(scores, axis=-1, keepdims=True)
    e = jnp.exp(scores - m)
    denom = jnp.sum(e, axis=-1, keepdims=True)
    # Exact reciprocal: the reciprocal acts on a (tq, 1) vector only, so the
    # approx EUP variant saves nothing and exact keeps rows summing to 1.
    p = e * pl.reciprocal(denom, approx=False)
    if with_attn:
        attn_ref[...] = p.astype(attn_ref.dtype)

    # ---- P @ V, again skipping value blocks above the diagonal ---------------
    acc_ref[...] = jnp.zeros_like(acc_ref)
    p_mxu = p.astype(_MXU_DTYPE)
    for j in range(nkv):
        @pl.when(j <= qi)
        def _():
            acc_ref[...] += jnp.dot(p_mxu[:, j * q_tile:(j + 1) * q_tile],
                                    v_ref[j * q_tile:(j + 1) * q_tile, :],
                                    preferred_element_type=jnp.float32)

    out_ref[...] = acc_ref[...].astype(out_ref.dtype)


def comrope_attention(qkv, cos, sin_signed, bias_mean, *, return_attn_weights=True,
                      attn_dtype=jnp.float32):
    """
    qkv:        [3, B, nh, S, hd] bf16 (q/k/v selected via BlockSpec index maps)
    cos, sin:   [S, hd] f32            (sin already sign-folded for rotate_half)
    bias_mean:  [S, 1] f32             (mean(contextual_bias, -1) * 0.1, precomputed)
    returns (attn_out [B, nh, S, hd] bf16, attn_weights [B, nh, S, S] or None)
    """
    _, B, nh, S, hd = qkv.shape
    tq = _pick_block(S, (256, 128, 64, 32, 16, 8))   # query-axis tiling bounds VMEM
    kernel = functools.partial(_comrope_attn_kernel, head_dim=hd, q_tile=tq,
                               with_attn=return_attn_weights)
    grid = (B, nh, S // tq)

    q_spec = pl.BlockSpec((None, None, None, tq, hd),
                          lambda b, h, qi: (0, b, h, qi, 0))
    k_spec = pl.BlockSpec((None, None, None, S, hd),
                          lambda b, h, qi: (1, b, h, 0, 0))
    v_spec = pl.BlockSpec((None, None, None, S, hd),
                          lambda b, h, qi: (2, b, h, 0, 0))
    out_spec = pl.BlockSpec((None, None, tq, hd), lambda b, h, qi: (b, h, qi, 0))
    attn_spec = pl.BlockSpec((None, None, tq, S), lambda b, h, qi: (b, h, qi, 0))

    out_struct = jax.ShapeDtypeStruct((B, nh, S, hd), _MXU_DTYPE)
    if return_attn_weights:
        out_shape = (out_struct, jax.ShapeDtypeStruct((B, nh, S, S), attn_dtype))
        out_specs = (out_spec, attn_spec)
    else:
        out_shape = out_struct
        out_specs = out_spec

    result = pl.pallas_call(
        kernel,
        out_shape=out_shape,
        grid=grid,
        in_specs=[
            q_spec, k_spec, v_spec,
            pl.BlockSpec((S, hd), lambda b, h, qi: (0, 0)),
            pl.BlockSpec((S, hd), lambda b, h, qi: (0, 0)),
            pl.BlockSpec((S, 1), lambda b, h, qi: (0, 0)),
        ],
        out_specs=out_specs,
        scratch_shapes=[
            pltpu.VMEM((hd, S), _MXU_DTYPE),    # k_emb^T, reused across q tiles
            pltpu.VMEM((tq, S), jnp.float32),   # full-row score buffer
            pltpu.VMEM((tq, hd), jnp.float32),  # P@V accumulator
        ],
        compiler_params=pltpu.CompilerParams(
            dimension_semantics=("parallel", "parallel", "arbitrary"),
            vmem_limit_bytes=_VMEM_LIMIT,
        ),
    )(qkv, qkv, qkv, cos, sin_signed, bias_mean)

    if return_attn_weights:
        return result
    return result, None


# ----------------------------------------------------------------------------
# Kernel 3: output projection directly from head-major attention output
#   out[b, s, :] = sum_h attn_out[b, h, s, :] @ Wo^T[h*hd:(h+1)*hd, :]
# ----------------------------------------------------------------------------
def _oproj_kernel(a_ref, w_ref, o_ref, acc_ref):
    @pl.when(pl.program_id(3) == 0)
    def _():
        acc_ref[...] = jnp.zeros_like(acc_ref)

    acc_ref[...] += jnp.dot(a_ref[...], w_ref[...],
                            preferred_element_type=jnp.float32)

    @pl.when(pl.program_id(3) == pl.num_programs(3) - 1)
    def _():
        o_ref[...] = acc_ref[...].astype(o_ref.dtype)


def pallas_oproj_from_heads(attn_out, w_o_heads, out_dtype=jnp.float32):
    """attn_out: [B, nh, S, hd] bf16, w_o_heads: [nh, hd, H] bf16 -> [B, S, H] f32."""
    B, nh, S, hd = attn_out.shape
    H = w_o_heads.shape[-1]
    ts = _pick_block(S, (512, 256, 128, 64, 32, 16, 8))
    tn = _pick_block(H, (512, 256, 128))              # tile the output-feature dim
    grid = (B, S // ts, H // tn, nh)                  # nh = reduction axis (last)
    return pl.pallas_call(
        _oproj_kernel,
        out_shape=jax.ShapeDtypeStruct((B, S, H), out_dtype),
        grid=grid,
        in_specs=[
            pl.BlockSpec((None, None, ts, hd), lambda b, s, n, h: (b, h, s, 0)),
            pl.BlockSpec((None, hd, tn), lambda b, s, n, h: (h, 0, n)),
        ],
        out_specs=pl.BlockSpec((None, ts, tn), lambda b, s, n, h: (b, s, n)),
        scratch_shapes=[pltpu.VMEM((ts, tn), jnp.float32)],
        compiler_params=pltpu.CompilerParams(
            dimension_semantics=("parallel", "parallel", "parallel", "arbitrary"),
            vmem_limit_bytes=_VMEM_LIMIT,
        ),
    )(attn_out, w_o_heads)


# ----------------------------------------------------------------------------
# Module-level glue (parameter setup, RoPE tables, reshapes)
# ----------------------------------------------------------------------------
def get_rotary_embeddings(seq_len, dim, base=10000.0):
    inv_freq = 1.0 / (base ** (jnp.arange(0, dim, 2, dtype=jnp.float32) / dim))
    t = jnp.arange(seq_len, dtype=jnp.float32)
    freqs = jnp.einsum("i,j->ij", t, inv_freq)
    emb = jnp.concatenate((freqs, freqs), axis=-1)
    return jnp.cos(emb), jnp.sin(emb)


def xavier_uniform(key, shape):
    fan_in, fan_out = shape[1], shape[0]
    a = math.sqrt(6.0 / (fan_in + fan_out))
    return jax.random.uniform(key, shape, jnp.float32, -a, a)


def init_comrope_params(key, hidden_size, num_heads, max_seq_len):
    k_q, k_k, k_v, k_o, k_b = jax.random.split(key, 5)
    head_dim = hidden_size // num_heads
    w_q = xavier_uniform(k_q, (hidden_size, hidden_size))
    w_k = xavier_uniform(k_k, (hidden_size, hidden_size))
    w_v = xavier_uniform(k_v, (hidden_size, hidden_size))
    w_o = xavier_uniform(k_o, (hidden_size, hidden_size))
    params = {
        # nn.Linear weights are [out_features, in_features] (kept for the reference)
        "w_q": w_q, "w_k": w_k, "w_v": w_v, "w_o": w_o,
        # pre-transposed / pre-stacked / pre-cast ONCE at init -> no per-call work
        "w_qkv_t_mxu": jnp.concatenate([w_q.T, w_k.T, w_v.T],
                                       axis=1).astype(_MXU_DTYPE),        # [H, 3H]
        "w_o_heads_mxu": w_o.T.reshape(num_heads, head_dim,
                                       hidden_size).astype(_MXU_DTYPE),   # [nh, hd, H]
        "contextual_bias": jnp.tril(
            jax.random.normal(k_b, (max_seq_len, max_seq_len), jnp.float32) * 0.02),
    }
    return params


def comrope_attention_forward(params, x, num_heads, return_attn_weights=True,
                              attn_dtype=jnp.float32):
    """x: [B, S, H] -> (output [B, S, H] f32, attn_weights [B, nh, S, S] or None)"""
    B, S, H = x.shape
    hd = H // num_heads

    # Fused Q/K/V projection: x cast to bf16 once, weights pre-cast at init.
    x2d = x.reshape(B * S, H).astype(_MXU_DTYPE)
    qkv2d = pallas_matmul(x2d, params["w_qkv_t_mxu"], out_dtype=_MXU_DTYPE)  # [B*S, 3H]

    # Head-major relayout for the attention kernel (now on bf16 -> half the bytes
    # of the previous f32 relayout).
    # TODO(synk): for head_dim % 128 == 0 this pass can be removed entirely by
    # indexing the [B*S, 3H] buffer with BlockSpec column blocks instead.
    qkv = qkv2d.reshape(B, S, 3, num_heads, hd).transpose(2, 0, 3, 1, 4)  # [3,B,nh,S,hd]

    # Grid-invariant tables precomputed once in the wrapper (position_ids = arange(S)).
    cos, sin = get_rotary_embeddings(S, hd)
    half = hd // 2
    sign = jnp.concatenate([-jnp.ones((half,), jnp.float32),
                            jnp.ones((hd - half,), jnp.float32)])
    sin_signed = sin * sign                                   # folds rotate_half's sign
    bias_mean = jnp.mean(params["contextual_bias"][:S, :S], axis=-1,
                         keepdims=True) * 0.1                 # [S, 1]
    # TODO(synk): contextual_dropout is identity (eval mode).

    attn_out, attn_weights = comrope_attention(
        qkv, cos, sin_signed, bias_mean,
        return_attn_weights=return_attn_weights, attn_dtype=attn_dtype)

    # Output projection straight from [B, nh, S, hd] (head axis = reduction axis).
    output = pallas_oproj_from_heads(attn_out, params["w_o_heads_mxu"])
    return output, attn_weights


# ----------------------------------------------------------------------------
# Pure-JAX reference (mirrors the PyTorch forward) for the sanity check.
# With match_kernel_precision=True it rounds matmul operands / intermediates to
# _MXU_DTYPE exactly where the Pallas pipeline does, so the comparison isolates
# logic errors from the intentional bf16 MXU policy.
# ----------------------------------------------------------------------------
def _reference_forward(params, x, num_heads, match_kernel_precision=True):
    B, S, H = x.shape
    hd = H // num_heads
    f32 = jnp.float32

    if match_kernel_precision:
        mx = lambda t: t.astype(_MXU_DTYPE)
        prec = None
    else:
        mx = lambda t: t
        prec = jax.lax.Precision.HIGHEST

    w_qkv_t = jnp.concatenate(
        [params["w_q"].T, params["w_k"].T, params["w_v"].T], axis=1)
    qkv2d = jnp.matmul(mx(x.reshape(B * S, H)), mx(w_qkv_t),
                       preferred_element_type=f32, precision=prec)
    qkv2d = mx(qkv2d).astype(f32)          # the projection kernel writes _MXU_DTYPE
    qkv = qkv2d.reshape(B, S, 3, num_heads, hd).transpose(2, 0, 3, 1, 4)
    q, k, v = qkv[0], qkv[1], qkv[2]

    cos, sin = get_rotary_embeddings(S, hd)

    def rot_half(t):
        t1, t2 = t[..., : hd // 2], t[..., hd // 2:]
        return jnp.concatenate((-t2, t1), axis=-1)

    bm = jnp.mean(params["contextual_bias"][:S, :S], axis=-1, keepdims=True) * 0.1
    qe = q * cos + rot_half(q) * sin + bm
    ke = k * cos + rot_half(k) * sin + bm
    scale = 1.0 / math.sqrt(hd)

    scores = jnp.einsum("bhqd,bhkd->bhqk", mx(qe * scale), mx(ke),
                        preferred_element_type=f32, precision=prec)
    causal = jnp.triu(jnp.ones((S, S), dtype=bool), k=1)
    scores = jnp.where(causal[None, None], -jnp.inf, scores)
    m = jnp.max(scores, axis=-1, keepdims=True)
    e = jnp.exp(scores - m)
    attn = e / jnp.sum(e, axis=-1, keepdims=True)

    attn_out = jnp.einsum("bhqk,bhkd->bhqd", mx(attn), mx(v),
                          preferred_element_type=f32, precision=prec)
    attn_out = mx(attn_out).astype(f32)    # the attention kernel writes _MXU_DTYPE
    o = attn_out.transpose(0, 2, 1, 3).reshape(B, S, H)
    out = jnp.matmul(mx(o), mx(params["w_o"].T),
                     preferred_element_type=f32, precision=prec)
    return out, attn


if __name__ == "__main__":
    B, S, H, NH = 2, 8, 32, 4
    MAX_SEQ = 16

    key = jax.random.PRNGKey(0)
    k_param, k_x = jax.random.split(key)
    params = init_comrope_params(k_param, H, NH, MAX_SEQ)
    x = jax.random.normal(k_x, (B, S, H), jnp.float32)

    out, attn = comrope_attention_forward(params, x, NH)
    out = jax.block_until_ready(out)
    attn = jax.block_until_ready(attn)

    ref_out, ref_attn = _reference_forward(params, x, NH, match_kernel_precision=True)
    assert out.shape == (B, S, H) and attn.shape == (B, NH, S, S)
    # tolerance covers residual f32 accumulation-order / reciprocal differences;
    # the intentional bf16 operand rounding is mirrored by the reference.
    assert jnp.allclose(out, ref_out, rtol=5e-3, atol=5e-3)
    assert jnp.allclose(attn, ref_attn, rtol=5e-3, atol=5e-3)

    # Flash-style path that skips materializing the (B, nh, S, S) weights.
    out_noattn, attn_none = comrope_attention_forward(
        params, x, NH, return_attn_weights=False)
    out_noattn = jax.block_until_ready(out_noattn)
    assert attn_none is None
    assert jnp.allclose(out_noattn, out, rtol=1e-3, atol=1e-3)

    print("KERNEL_OK")
</pallas_src>

<mosaic_0001>
module attributes {stable_mosaic.version = 11 : i64} {
  func.func @_matmul_kernel(%arg0: i32, %arg1: i32, %arg2: i32, %arg3: memref<16x32xbf16, #tpu.memory_space<vmem>>, %arg4: memref<32x96xbf16, #tpu.memory_space<vmem>>, %arg5: memref<16x96xbf16, #tpu.memory_space<vmem>>, %arg6: memref<16x96xf32, #tpu.memory_space<vmem>>) attributes {dimension_semantics = [#tpu.dimension_semantics<parallel>, #tpu.dimension_semantics<parallel>, #tpu.dimension_semantics<arbitrary>], iteration_bounds = array<i64: 1, 1, 1>, scalar_prefetch = 0 : i64, scratch_operands = 1 : i64, tpu.core_type = #tpu.core_type<tc>, window_params = [{transform_indices = @transform_0, window_bounds = array<i64: 16, 32>}, {transform_indices = @transform_1, window_bounds = array<i64: 32, 96>}, {transform_indices = @transform_2, window_bounds = array<i64: 16, 96>}]} {
    %c0_i32 = arith.constant 0 : i32
    %0 = arith.cmpi eq, %arg2, %c0_i32 : i32
    %1 = arith.extui %0 : i1 to i32
    %c0_i32_0 = arith.constant 0 : i32
    %2 = arith.cmpi ne, %1, %c0_i32_0 : i32
    scf.if %2 {
      %cst_10 = arith.constant 0.000000e+00 : f32
      %12 = vector.broadcast %cst_10 : f32 to vector<16x96xf32>
      %c0_11 = arith.constant 0 : index
      %c0_12 = arith.constant 0 : index
      %13 = vector.load %arg6[%c0_11, %c0_12] : memref<16x96xf32, #tpu.memory_space<vmem>>, vector<16x96xf32>
      tpu.vector_store %arg6[%c0_11, %c0_12], %12 {strides = array<i32>} : memref<16x96xf32, #tpu.memory_space<vmem>>, vector<16x96xf32>,
    } else {
    }
    %c0 = arith.constant 0 : index
    %c0_1 = arith.constant 0 : index
    %3 = vector.load %arg6[%c0, %c0_1] : memref<16x96xf32, #tpu.memory_space<vmem>>, vector<16x96xf32>
    %c0_2 = arith.constant 0 : index
    %c0_3 = arith.constant 0 : index
    %4 = vector.load %arg3[%c0_2, %c0_3] : memref<16x32xbf16, #tpu.memory_space<vmem>>, vector<16x32xbf16>
    %c0_4 = arith.constant 0 : index
    %c0_5 = arith.constant 0 : index
    %5 = vector.load %arg4[%c0_4, %c0_5] : memref<32x96xbf16, #tpu.memory_space<vmem>>, vector<32x96xbf16>
    %cst = arith.constant dense<0.000000e+00> : vector<16x96xf32>
    %6 = tpu.matmul %4, %5, %cst {dimension_numbers = #tpu.dot_dimension_numbers<[1], [0], [0], [1], [0, 0, 1, 1], [], []>} : vector<16x32xbf16>, vector<32x96xbf16>, vector<16x96xf32> -> vector<16x96xf32>
    %7 = arith.addf %3, %6 : vector<16x96xf32>
    %c0_6 = arith.constant 0 : index
    %c0_7 = arith.constant 0 : index
    %8 = vector.load %arg6[%c0_6, %c0_7] : memref<16x96xf32, #tpu.memory_space<vmem>>, vector<16x96xf32>
    tpu.vector_store %arg6[%c0_6, %c0_7], %7 {strides = array<i32>} : memref<16x96xf32, #tpu.memory_space<vmem>>, vector<16x96xf32>,
    %c0_i32_8 = arith.constant 0 : i32
    %9 = arith.cmpi eq, %arg2, %c0_i32_8 : i32
    %10 = arith.extui %9 : i1 to i32
    %c0_i32_9 = arith.constant 0 : i32
    %11 = arith.cmpi ne, %10, %c0_i32_9 : i32
    scf.if %11 {
      %c0_10 = arith.constant 0 : index
      %c0_11 = arith.constant 0 : index
      %12 = vector.load %arg6[%c0_10, %c0_11] : memref<16x96xf32, #tpu.memory_space<vmem>>, vector<16x96xf32>
      %13 = arith.truncf %12 : vector<16x96xf32> to vector<16x96xbf16>
      %c0_12 = arith.constant 0 : index
      %c0_13 = arith.constant 0 : index
      %14 = vector.load %arg5[%c0_12, %c0_13] : memref<16x96xbf16, #tpu.memory_space<vmem>>, vector<16x96xbf16>
      tpu.vector_store %arg5[%c0_12, %c0_13], %13 {strides = array<i32>} : memref<16x96xbf16, #tpu.memory_space<vmem>>, vector<16x96xbf16>,
    } else {
    }
    return
  }
  func.func @transform_0(%arg0: i32, %arg1: i32, %arg2: i32) -> (i32, i32) {
    %c0_i32 = arith.constant 0 : i32
    return %arg0, %arg2 : i32, i32
  }
  func.func @transform_1(%arg0: i32, %arg1: i32, %arg2: i32) -> (i32, i32) {
    %c0_i32 = arith.constant 0 : i32
    return %arg2, %arg1 : i32, i32
  }
  func.func @transform_2(%arg0: i32, %arg1: i32, %arg2: i32) -> (i32, i32) {
    %c0_i32 = arith.constant 0 : i32
    return %arg0, %arg1 : i32, i32
  }
}

</mosaic_0001>

<llo_original>
// kernel: tpu_custom_call.1
$region0: #{tpu_custom_call.1}
  #allocation0 [shape = 'u32[]', space=smem, size = 0x4, offset = 0x4, fixed_abs, tag = 'smem constant byte address 0x4 - core index']
  #allocation1 [shape = 'u32[144,128]{1,0:T(1,128)}', space=vmem, size = 0x12000, scoped, tag = 'internal scratch']
  #allocation2 [shape = 'f32[16,96]{1,0:T(8,128)}', space=vmem, size = 0x2000, scoped, tag = 'scratch operand']
  %s0 = inlined_call_operand.hbm [shape: bf16[16,32], index: 0, kind: input, shape index: {}]
  %s1 = inlined_call_operand.hbm [shape: bf16[32,96], index: 1, kind: input, shape index: {}]
  %s2 = inlined_call_operand.hbm [shape: bf16[16,96], index: 2, kind: output, shape index: {}]
  %s3 = sld [smem:[#allocation0]]
  $region34: #{tpu_custom_call.1} parent=0
    _
  %s5 = ssub.s32 1, %s3
  %s6 = scalar_select 0, %s5, %s3
  $region1: #{tpu_custom_call.1} parent=0
    #allocation3 [shape = 'u8[4096]{0}', space=vmem, size = 0x1000, scoped, tag = 'input window, operand 0, single buffered']
    #allocation4 [shape = 's32[1]{0}', space=sflag, size = 0x4, scoped, tag = 'scoped memory for tpu_custom_call.1']
    #allocation5 [shape = 's32[1]{0}', space=sflag, size = 0x4, scoped, tag = 'scoped memory for tpu_custom_call.1']
    #allocation6 [shape = 'u8[8192]{0}', space=vmem, size = 0x2000, scoped, tag = 'input window, operand 1, single buffered']
    #allocation7 [shape = 's32[1]{0}', space=sflag, size = 0x4, scoped, tag = 'scoped memory for tpu_custom_call.1']
    #allocation8 [shape = 'u8[4096]{0}', space=vmem, size = 0x1000, scoped, tag = 'output window, operand 0, single buffered']
    %7 = vsyncpa [#allocation4], 0
    %8 = vsyncpa [#allocation7], 0
    %9 = vsyncpa [#allocation5], 0
    // Predicated region
    $region2: #{tpu_custom_call.1} parent=1 // pred_check
      _
    $region3: #{tpu_custom_call.1} parent=1 // pred_check_branch
      %11 = sbr.rel (0) target = $region5
    $region4: #{tpu_custom_call.1} parent=1 // pred_region
      %s13 = ssub.s32 128, 128
      %14 = vsyncadd [#allocation4], %s13
      %s15 = sshll.u32 [#allocation3], 4
      %s16 = int_to_ptr.vmem [resolvable:$true] %s15
      %21 = dma.hbm_to_vmem [thread:$0]  %s0, 128, %s16, [#allocation4], 64, 64, 4
    $region5: #{tpu_custom_call.1} parent=1 // pred_fallthru
      _
    // Predicated region
    $region6: #{tpu_custom_call.1} parent=1 // pred_check
      _
    $region7: #{tpu_custom_call.1} parent=1 // pred_check_branch
      %23 = sbr.rel (0) target = $region9
    $region8: #{tpu_custom_call.1} parent=1 // pred_region
      %s25 = ssub.s32 256, 256
      %26 = vsyncadd [#allocation7], %s25
      %s27 = sshll.u32 [#allocation6], 4
      %s28 = int_to_ptr.vmem [resolvable:$true] %s27
      %33 = dma.hbm_to_vmem [thread:$0]  %s1, 256, %s28, [#allocation7], 64, 64, 4
    $region9: #{tpu_custom_call.1} parent=1 // pred_fallthru
      _
    // Predicated region
    $region10: #{tpu_custom_call.1} parent=1 // pred_check
      _
    $region11: #{tpu_custom_call.1} parent=1 // pred_check_branch
      %35 = sbr.rel (0) target = $region13
    $region12: #{tpu_custom_call.1} parent=1 // pred_region
      %36 = dma.done [#allocation4], 128
    $region13: #{tpu_custom_call.1} parent=1 // pred_fallthru
      _
    // Predicated region
    $region14: #{tpu_custom_call.1} parent=1 // pred_check
      _
    $region15: #{tpu_custom_call.1} parent=1 // pred_check_branch
      %38 = sbr.rel (0) target = $region17
    $region16: #{tpu_custom_call.1} parent=1 // pred_region
      %39 = dma.done [#allocation7], 256
    $region17: #{tpu_custom_call.1} parent=1 // pred_fallthru
      _
    %p41 = scmp.eq.s32.totalorder 0, 0
    // Predicated region
    $region18: #{tpu_custom_call.1} parent=1 // pred_check
      %p42 = pneg %p41
    $region19: #{tpu_custom_call.1} parent=1 // pred_check_branch
      %44 = sbr.rel (%p42) target = $region21
    $region20: #{tpu_custom_call.1} parent=1 // pred_region
      %vm45 = vcmask 785408
      %46 = vst.msk [vmem:[#allocation2] sm:$0xff] %vm45, 0.0
      %47 = vst.msk [vmem:[#allocation2 + $0x8] sm:$0xff] %vm45, 0.0
    $region21: #{tpu_custom_call.1} parent=1 // pred_fallthru
      _
    %v48 = vld [vmem:[#allocation2] sm:$0xff]
    %v49 = vld [vmem:[#allocation2 + $0x8] sm:$0xff]
    %v50 = vld [vmem:[#allocation3] sm:$0xf]
    %v51 = vld [vmem:[#allocation3 + $0x4] sm:$0xf]
    %v52 = vld [vmem:[#allocation6] sm:$0xf]
    %v53 = vld [vmem:[#allocation6 + $0x4] sm:$0xf]
    %v54 = vld [vmem:[#allocation6 + $0x8] sm:$0xf]
    %v55 = vld [vmem:[#allocation6 + $0xc] sm:$0xf]
    %v58 = vunpack.c.l.b16 %v50
    %v59 = vunpack.c.l.b16 %v51
    %v60 = vpack.c.b16 %v59, %v58
    %v65 = vunpack.c.l.b16 %v52
    %v66 = vunpack.c.l.b16 %v53
    %v67 = vunpack.c.l.b16 %v54
    %v68 = vunpack.c.l.b16 %v55
    %v69 = vpack.c.b16 %v66, %v65
    %v70 = vpack.c.b16 %v68, %v67
    %vm73 = vcmask 261120
    %v75 = vsel %vm73, %v60, 0
    %77 = vmatprep.subr.bf16.mxu0 0
    %78 = vmatpush1.bf16.msra.mxu0 %v69
    %79 = vmatprep.subr.bf16.mxu0 0
    %80 = vmatpush1.bf16.msra.mxu0 %v70
    %81 = vmatprep.subr.bf16.mxu0 0
    %82 = vmatpush1.bf16.msra.mxu0 0
    %83 = vmatprep.subr.bf16.mxu0 0
    %84 = vmatpush1.bf16.msra.mxu0 0
    %85 = vmatprep.subr.bf16.mxu0 0
    %86 = vmatpush1.bf16.msra.mxu0 0
    %87 = vmatprep.subr.bf16.mxu0 0
    %88 = vmatpush1.bf16.msra.mxu0 0
    %89 = vmatprep.subr.bf16.mxu0 0
    %90 = vmatpush1.bf16.msra.mxu0 0
    %91 = vmatprep.subr.bf16.mxu0 0
    %92 = vmatpush1.bf16.msra.mxu0 0
    %93 = vmatprep.subr.bf16.mxu0 0
    %94 = vmatpush1.bf16.msra.mxu0 0
    %95 = vmatprep.subr.bf16.mxu0 0
    %96 = vmatpush1.bf16.msra.mxu0 0
    %97 = vmatprep.subr.bf16.mxu0 0
    %98 = vmatpush1.bf16.msra.mxu0 0
    %99 = vmatprep.subr.bf16.mxu0 0
    %100 = vmatpush1.bf16.msra.mxu0 0
    %101 = vmatprep.subr.bf16.mxu0 0
    %102 = vmatpush1.bf16.msra.mxu0 0
    %103 = vmatprep.subr.bf16.mxu0 0
    %104 = vmatpush1.bf16.msra.mxu0 0
    %105 = vmatprep.subr.bf16.mxu0 0
    %106 = vmatpush1.bf16.msra.mxu0 0
    %107 = vmatprep.subr.bf16.mxu0 0
    %108 = vmatpush1.bf16.msra.mxu0 0
    %109 = vmatprep.mubr.bf16.mxu0 0
    %110 = vmatmul.mubr.bf16.gmra.mrb[0].mxu0 %v75
    %v111 = vpop.f32.mrb[0].mxu0
    %v112 = vadd.f32 0.0, %v111
    %v113 = vpop.f32.mrb[0].mxu0
    %v114 = vpop.f32.mrb[0].mxu0
    %v115 = vadd.f32 0.0, %v114
    %v116 = vpop.f32.mrb[0].mxu0
    %117 = vdwg.mxu0
    %v118 = vadd.f32 %v48, %v112
    %v119 = vadd.f32 %v49, %v115
    %vm120 = vcmask 785408
    %121 = vst.msk [vmem:[#allocation2] sm:$0xff] %vm120, %v118
    %122 = vst.msk [vmem:[#allocation2 + $0x8] sm:$0xff] %vm120, %v119
    // Predicated region
    $region22: #{tpu_custom_call.1} parent=1 // pred_check
      %p123 = pneg %p41
    $region23: #{tpu_custom_call.1} parent=1 // pred_check_branch
      %125 = sbr.rel (%p123) target = $region25
    $region24: #{tpu_custom_call.1} parent=1 // pred_region
      %v126 = vld [vmem:[#allocation2] sm:$0xff]
      %v127 = vld [vmem:[#allocation2 + $0x8] sm:$0xff]
      %v128 = vpack.c.bf16 %v127, %v126
      %v130 = vunpack.c.l.b16 %v128
      %v131 = vunpack.c.h.b16 %v128
      %v132 = vpack.c.b16 %v130, %v130
      %v133 = vpack.c.b16 %v131, %v131
      %vm136 = vcmask 781312
      %137 = vst.msk [vmem:[#allocation8] sm:$0xf] %vm136, %v132
      %138 = vst.msk [vmem:[#allocation8 + $0x4] sm:$0xf] %vm136, %v133
    $region25: #{tpu_custom_call.1} parent=1 // pred_fallthru
      _
    // Predicated region
    $region26: #{tpu_custom_call.1} parent=1 // pred_check
      _
    $region27: #{tpu_custom_call.1} parent=1 // pred_check_branch
      %140 = sbr.rel (0) target = $region29
    $region28: #{tpu_custom_call.1} parent=1 // pred_region
      %s142 = ssub.s32 128, 128
      %143 = vsyncadd [#allocation5], %s142
      %s144 = sshll.u32 [#allocation8], 4
      %s145 = int_to_ptr.vmem [resolvable:$true] %s144
      %150 = dma.vmem_to_hbm [thread:$0]  %s145, 128, %s2, [#allocation5], 64, 64, 4
    $region29: #{tpu_custom_call.1} parent=1 // pred_fallthru
      _
    // Predicated region
    $region30: #{tpu_custom_call.1} parent=1 // pred_check
      _
    $region31: #{tpu_custom_call.1} parent=1 // pred_check_branch
      %152 = sbr.rel (0) target = $region33
    $region32: #{tpu_custom_call.1} parent=1 // pred_region
      %153 = dma.done [#allocation5], 128
    $region33: #{tpu_custom_call.1} parent=1 // pred_fallthru
      _
    %154 = vsyncpa [#allocation4], 1
    %155 = vsyncpa [#allocation7], 1
    %156 = vsyncpa [#allocation5], 1

</llo_original>
